<compile_context>
chip_gen: v7x
topology: tpu7x:2x2x1
jax: 0.10.0
libtpu: 0.0.40
codegen_flags: <defaults>
</compile_context>

<pallas_src>
import functools

import jax
import jax.numpy as jnp
import numpy as np
from jax.experimental import pallas as pl
from jax.experimental.pallas import tpu as pltpu


def _round_up(x, m):
    return ((x + m - 1) // m) * m


def _concat_conv2d_kernel(x_ref, w_ref, b_ref, o_ref, xpad_ref, slab_ref, *,
                          KH, KW, W, HW, Cin, K, M_out_p):
    """Fused valid-conv for one batch element (transposed / NCHW-native layout).

    x_ref:    (1, Cin, HW)        f32  NCHW image, spatial flattened on lanes
    w_ref:    (Cout_s, K_p)       bf16 weights, contraction idx = (kh*KW+kw)*Cin+c
    b_ref:    (Cout_s, 1)         f32  bias with folded t contribution
    o_ref:    (1, Cout_s, M_out_p)     output, column r = oh*W + ow (junk cols
                                       r >= M_out are cropped by the wrapper)
    xpad_ref: (Cin, XPAD_W)       bf16 scratch: cast-once, right-zero-padded image
    slab_ref: (K_p, M_out_p)      bf16 scratch: im2col slab
    """
    XPAD_W = xpad_ref.shape[1]
    K_p = slab_ref.shape[0]

    # --- hoisted f32 -> bf16 cast (exactly once) + zero right-pad.
    #     Reads past HW only feed output columns >= M_out, which are discarded,
    #     but zeroing keeps them deterministic / NaN-free.
    if XPAD_W > HW:
        xpad_ref[:, HW:] = jnp.zeros((Cin, XPAD_W - HW), jnp.bfloat16)
    xpad_ref[:, :HW] = x_ref[0].astype(jnp.bfloat16)

    # --- fused im2col: KH*KW lane-shifted copies, paid once (the shifts are
    #     XLU lane rotations, off the VALU/MXU critical path).
    for kh in range(KH):
        for kw in range(KW):
            tap = kh * KW + kw
            off = kh * W + kw            # static flattened-spatial shift
            slab_ref[tap * Cin:(tap + 1) * Cin, :] = \
                xpad_ref[:, off:off + M_out_p]
    if K_p > K:                          # zero the K-padding rows once
        slab_ref[K:, :] = jnp.zeros((K_p - K, M_out_p), jnp.bfloat16)

    # --- one big-K MXU dot, bf16 operands, f32 accumulation, f32 epilogue.
    acc = jnp.dot(w_ref[...], slab_ref[...],
                  preferred_element_type=jnp.float32)      # (Cout_s, M_out_p)
    o_ref[0] = (acc + b_ref[...]).astype(o_ref.dtype)


def concat_conv2d_forward(t, x_nchw, weight_oihw, bias_o, *, ksize=3):
    """Equivalent of ConcatConv2d.forward(t, x) with stride=1, padding=0."""
    B, Cin, H, W = x_nchw.shape
    Cout = weight_oihw.shape[0]
    KH = KW = ksize
    Ho, Wo = H - KH + 1, W - KW + 1
    HW = H * W

    K = KH * KW * Cin                    # contraction depth (t channel dropped)
    K_p = _round_up(K, 8)                # sublane-aligned slab rows
    Cout_s = _round_up(Cout, 8)          # sublane-aligned output channels
    M_out_p = _round_up(Ho * W, 128)     # lane-dense output width (spatial)
    max_off = (KH - 1) * W + (KW - 1)    # largest flattened tap shift
    XPAD_W = _round_up(max_off + M_out_p, 128)   # padded image width (no OOB)

    # --- fold the constant t channel into the bias (valid conv, stride 1)
    t32 = jnp.asarray(t, jnp.float32)
    bias_eff = (bias_o.astype(jnp.float32)
                + t32 * jnp.sum(weight_oihw[:, 0, :, :].astype(jnp.float32),
                                axis=(1, 2)))
    b_mat = jnp.pad(bias_eff.reshape(Cout, 1), ((0, Cout_s - Cout), (0, 0)))

    # --- weights: (Cout, Cin+1, KH, KW) -> drop t channel -> (Cout_s, K_p) bf16
    #     contraction index order (kh, kw, c) must match the slab layout.
    w_mat = jnp.transpose(weight_oihw[:, 1:, :, :], (0, 2, 3, 1)).reshape(Cout, K)
    w_mat = jnp.pad(w_mat, ((0, Cout_s - Cout), (0, K_p - K))).astype(jnp.bfloat16)

    # --- NCHW -> (B, Cin, H*W): pure reshape, no HBM transpose pass.
    x_chw = x_nchw.reshape(B, Cin, HW)

    kernel = functools.partial(_concat_conv2d_kernel, KH=KH, KW=KW, W=W, HW=HW,
                               Cin=Cin, K=K, M_out_p=M_out_p)

    # conservative scoped-VMEM request (double-buffered blocks + scratches),
    # clamped so it is safe on v5e/v6e (128 MiB) and v7x (64 MiB physical).
    blk_bytes = (2 * (Cin * HW * 4 + Cout_s * M_out_p * 4)
                 + 2 * (Cout_s * K_p * 2 + Cout_s * 4)
                 + Cin * XPAD_W * 2 + K_p * M_out_p * 2)
    vmem_limit = int(min(max(4 * blk_bytes, 16 * 2 ** 20), 48 * 2 ** 20))

    out_t = pl.pallas_call(
        kernel,
        out_shape=jax.ShapeDtypeStruct((B, Cout_s, M_out_p), x_nchw.dtype),
        grid=(B,),
        in_specs=[
            pl.BlockSpec((1, Cin, HW), lambda b: (b, 0, 0)),     # image (NCHW)
            pl.BlockSpec((Cout_s, K_p), lambda b: (0, 0)),       # weights
            pl.BlockSpec((Cout_s, 1), lambda b: (0, 0)),         # bias
        ],
        out_specs=pl.BlockSpec((1, Cout_s, M_out_p), lambda b: (b, 0, 0)),
        scratch_shapes=[
            pltpu.VMEM((Cin, XPAD_W), jnp.bfloat16),             # cast-once image
            pltpu.VMEM((K_p, M_out_p), jnp.bfloat16),            # im2col slab
        ],
        compiler_params=pltpu.CompilerParams(
            dimension_semantics=("parallel",),
            vmem_limit_bytes=vmem_limit),
    )(x_chw, w_mat, b_mat)

    # Already NCHW-ordered.  Column r = oh*W + ow is valid for ow < Wo; crop the
    # channel padding, the flattened tail, and the wrap-around columns.
    out = out_t[:, :Cout, :Ho * W].reshape(B, Cout, Ho, W)[:, :, :, :Wo]
    return out


if __name__ == "__main__":
    key = jax.random.PRNGKey(0)
    kx, kw_, kb = jax.random.split(key, 3)

    B, dim_in, dim_out, H, W, ksize = 2, 4, 8, 16, 16, 3

    # deterministic synthetic parameters (PyTorch-style uniform(-1/sqrt(fan_in), .))
    fan_in = (dim_in + 1) * ksize * ksize
    bound = 1.0 / np.sqrt(fan_in)
    weight = jax.random.uniform(kw_, (dim_out, dim_in + 1, ksize, ksize),
                                minval=-bound, maxval=bound, dtype=jnp.float32)
    bias = jax.random.uniform(kb, (dim_out,),
                              minval=-bound, maxval=bound, dtype=jnp.float32)

    x = jax.random.normal(kx, (B, dim_in, H, W), dtype=jnp.float32)
    t = jnp.float32(0.5)

    fwd = jax.jit(concat_conv2d_forward, static_argnames=("ksize",))
    out = jax.block_until_ready(fwd(t, x, weight, bias, ksize=ksize))
    assert out.shape == (B, dim_out, H - ksize + 1, W - ksize + 1), out.shape

    # pure-JAX reference (concat + conv), sanity-check the kernel
    tt_ref = jnp.full((B, 1, H, W), t, dtype=x.dtype)
    xc_ref = jnp.concatenate([tt_ref, x], axis=1)
    ref = jax.lax.conv_general_dilated(
        xc_ref, weight, window_strides=(1, 1), padding="VALID",
        dimension_numbers=("NCHW", "OIHW", "NCHW")) + bias[None, :, None, None]
    np.testing.assert_allclose(np.asarray(out), np.asarray(ref),
                               atol=5e-2, rtol=5e-2)

    print("KERNEL_OK")
</pallas_src>

<mosaic_0001>
module attributes {stable_mosaic.version = 11 : i64} {
  func.func @_concat_conv2d_kernel(%arg0: i32, %arg1: memref<1x4x256xf32, #tpu.memory_space<vmem>>, %arg2: memref<8x40xbf16, #tpu.memory_space<vmem>>, %arg3: memref<8x1xf32, #tpu.memory_space<vmem>>, %arg4: memref<1x8x256xf32, #tpu.memory_space<vmem>>, %arg5: memref<4x384xbf16, #tpu.memory_space<vmem>>, %arg6: memref<40x256xbf16, #tpu.memory_space<vmem>>) attributes {dimension_semantics = [#tpu.dimension_semantics<parallel>], iteration_bounds = array<i64: 2>, scalar_prefetch = 0 : i64, scratch_operands = 2 : i64, tpu.core_type = #tpu.core_type<tc>, window_params = [{transform_indices = @transform_0, window_bounds = array<i64: 1, 4, 256>}, {pipeline_mode = #tpu.pipeline_mode<synchronous>, transform_indices = @transform_1, window_bounds = array<i64: 8, 40>}, {pipeline_mode = #tpu.pipeline_mode<synchronous>, transform_indices = @transform_2, window_bounds = array<i64: 8, 1>}, {transform_indices = @transform_3, window_bounds = array<i64: 1, 8, 256>}]} {
    %cst = arith.constant 0.000000e+00 : bf16
    %0 = vector.broadcast %cst : bf16 to vector<4x128xbf16>
    %c0 = arith.constant 0 : index
    %c256 = arith.constant 256 : index
    %1 = vector.load %arg5[%c0, %c256] : memref<4x384xbf16, #tpu.memory_space<vmem>>, vector<4x128xbf16>
    tpu.vector_store %arg5[%c0, %c256], %0 {strides = array<i32>} : memref<4x384xbf16, #tpu.memory_space<vmem>>, vector<4x128xbf16>,
    %c0_0 = arith.constant 0 : index
    %c0_1 = arith.constant 0 : index
    %c0_2 = arith.constant 0 : index
    %2 = vector.load %arg1[%c0_0, %c0_1, %c0_2] : memref<1x4x256xf32, #tpu.memory_space<vmem>>, vector<1x4x256xf32>
    %3 = vector.shape_cast %2 : vector<1x4x256xf32> to vector<4x256xf32>
    %4 = arith.truncf %3 : vector<4x256xf32> to vector<4x256xbf16>
    %c0_3 = arith.constant 0 : index
    %c0_4 = arith.constant 0 : index
    %5 = vector.load %arg5[%c0_3, %c0_4] : memref<4x384xbf16, #tpu.memory_space<vmem>>, vector<4x256xbf16>
    tpu.vector_store %arg5[%c0_3, %c0_4], %4 {strides = array<i32>} : memref<4x384xbf16, #tpu.memory_space<vmem>>, vector<4x256xbf16>,
    %c0_5 = arith.constant 0 : index
    %c0_6 = arith.constant 0 : index
    %6 = vector.load %arg5[%c0_5, %c0_6] : memref<4x384xbf16, #tpu.memory_space<vmem>>, vector<4x256xbf16>
    %c0_7 = arith.constant 0 : index
    %c0_8 = arith.constant 0 : index
    %7 = vector.load %arg6[%c0_7, %c0_8] : memref<40x256xbf16, #tpu.memory_space<vmem>>, vector<4x256xbf16>
    tpu.vector_store %arg6[%c0_7, %c0_8], %6 {strides = array<i32>} : memref<40x256xbf16, #tpu.memory_space<vmem>>, vector<4x256xbf16>,
    %c0_9 = arith.constant 0 : index
    %c1 = arith.constant 1 : index
    %8 = vector.load %arg5[%c0_9, %c1] : memref<4x384xbf16, #tpu.memory_space<vmem>>, vector<4x256xbf16>
    %c4 = arith.constant 4 : index
    %c0_10 = arith.constant 0 : index
    %9 = vector.load %arg6[%c4, %c0_10] : memref<40x256xbf16, #tpu.memory_space<vmem>>, vector<4x256xbf16>
    tpu.vector_store %arg6[%c4, %c0_10], %8 {strides = array<i32>} : memref<40x256xbf16, #tpu.memory_space<vmem>>, vector<4x256xbf16>,
    %c0_11 = arith.constant 0 : index
    %c2 = arith.constant 2 : index
    %10 = vector.load %arg5[%c0_11, %c2] : memref<4x384xbf16, #tpu.memory_space<vmem>>, vector<4x256xbf16>
    %c8 = arith.constant 8 : index
    %c0_12 = arith.constant 0 : index
    %11 = vector.load %arg6[%c8, %c0_12] : memref<40x256xbf16, #tpu.memory_space<vmem>>, vector<4x256xbf16>
    tpu.vector_store %arg6[%c8, %c0_12], %10 {strides = array<i32>} : memref<40x256xbf16, #tpu.memory_space<vmem>>, vector<4x256xbf16>,
    %c0_13 = arith.constant 0 : index
    %c16 = arith.constant 16 : index
    %12 = vector.load %arg5[%c0_13, %c16] : memref<4x384xbf16, #tpu.memory_space<vmem>>, vector<4x256xbf16>
    %c12 = arith.constant 12 : index
    %c0_14 = arith.constant 0 : index
    %13 = vector.load %arg6[%c12, %c0_14] : memref<40x256xbf16, #tpu.memory_space<vmem>>, vector<4x256xbf16>
    tpu.vector_store %arg6[%c12, %c0_14], %12 {strides = array<i32>} : memref<40x256xbf16, #tpu.memory_space<vmem>>, vector<4x256xbf16>,
    %c0_15 = arith.constant 0 : index
    %c17 = arith.constant 17 : index
    %14 = vector.load %arg5[%c0_15, %c17] : memref<4x384xbf16, #tpu.memory_space<vmem>>, vector<4x256xbf16>
    %c16_16 = arith.constant 16 : index
    %c0_17 = arith.constant 0 : index
    %15 = vector.load %arg6[%c16_16, %c0_17] : memref<40x256xbf16, #tpu.memory_space<vmem>>, vector<4x256xbf16>
    tpu.vector_store %arg6[%c16_16, %c0_17], %14 {strides = array<i32>} : memref<40x256xbf16, #tpu.memory_space<vmem>>, vector<4x256xbf16>,
    %c0_18 = arith.constant 0 : index
    %c18 = arith.constant 18 : index
    %16 = vector.load %arg5[%c0_18, %c18] : memref<4x384xbf16, #tpu.memory_space<vmem>>, vector<4x256xbf16>
    %c20 = arith.constant 20 : index
    %c0_19 = arith.constant 0 : index
    %17 = vector.load %arg6[%c20, %c0_19] : memref<40x256xbf16, #tpu.memory_space<vmem>>, vector<4x256xbf16>
    tpu.vector_store %arg6[%c20, %c0_19], %16 {strides = array<i32>} : memref<40x256xbf16, #tpu.memory_space<vmem>>, vector<4x256xbf16>,
    %c0_20 = arith.constant 0 : index
    %c32 = arith.constant 32 : index
    %18 = vector.load %arg5[%c0_20, %c32] : memref<4x384xbf16, #tpu.memory_space<vmem>>, vector<4x256xbf16>
    %c24 = arith.constant 24 : index
    %c0_21 = arith.constant 0 : index
    %19 = vector.load %arg6[%c24, %c0_21] : memref<40x256xbf16, #tpu.memory_space<vmem>>, vector<4x256xbf16>
    tpu.vector_store %arg6[%c24, %c0_21], %18 {strides = array<i32>} : memref<40x256xbf16, #tpu.memory_space<vmem>>, vector<4x256xbf16>,
    %c0_22 = arith.constant 0 : index
    %c33 = arith.constant 33 : index
    %20 = vector.load %arg5[%c0_22, %c33] : memref<4x384xbf16, #tpu.memory_space<vmem>>, vector<4x256xbf16>
    %c28 = arith.constant 28 : index
    %c0_23 = arith.constant 0 : index
    %21 = vector.load %arg6[%c28, %c0_23] : memref<40x256xbf16, #tpu.memory_space<vmem>>, vector<4x256xbf16>
    tpu.vector_store %arg6[%c28, %c0_23], %20 {strides = array<i32>} : memref<40x256xbf16, #tpu.memory_space<vmem>>, vector<4x256xbf16>,
    %c0_24 = arith.constant 0 : index
    %c34 = arith.constant 34 : index
    %22 = vector.load %arg5[%c0_24, %c34] : memref<4x384xbf16, #tpu.memory_space<vmem>>, vector<4x256xbf16>
    %c32_25 = arith.constant 32 : index
    %c0_26 = arith.constant 0 : index
    %23 = vector.load %arg6[%c32_25, %c0_26] : memref<40x256xbf16, #tpu.memory_space<vmem>>, vector<4x256xbf16>
    tpu.vector_store %arg6[%c32_25, %c0_26], %22 {strides = array<i32>} : memref<40x256xbf16, #tpu.memory_space<vmem>>, vector<4x256xbf16>,
    %cst_27 = arith.constant 0.000000e+00 : bf16
    %24 = vector.broadcast %cst_27 : bf16 to vector<4x256xbf16>
    %c36 = arith.constant 36 : index
    %c0_28 = arith.constant 0 : index
    %25 = vector.load %arg6[%c36, %c0_28] : memref<40x256xbf16, #tpu.memory_space<vmem>>, vector<4x256xbf16>
    tpu.vector_store %arg6[%c36, %c0_28], %24 {strides = array<i32>} : memref<40x256xbf16, #tpu.memory_space<vmem>>, vector<4x256xbf16>,
    %c0_29 = arith.constant 0 : index
    %c0_30 = arith.constant 0 : index
    %26 = vector.load %arg2[%c0_29, %c0_30] : memref<8x40xbf16, #tpu.memory_space<vmem>>, vector<8x40xbf16>
    %c0_31 = arith.constant 0 : index
    %c0_32 = arith.constant 0 : index
    %27 = vector.load %arg6[%c0_31, %c0_32] : memref<40x256xbf16, #tpu.memory_space<vmem>>, vector<40x256xbf16>
    %cst_33 = arith.constant dense<0.000000e+00> : vector<8x256xf32>
    %28 = tpu.matmul %26, %27, %cst_33 {dimension_numbers = #tpu.dot_dimension_numbers<[1], [0], [0], [1], [0, 0, 1, 1], [], []>} : vector<8x40xbf16>, vector<40x256xbf16>, vector<8x256xf32> -> vector<8x256xf32>
    %c0_34 = arith.constant 0 : index
    %c0_35 = arith.constant 0 : index
    %29 = vector.load %arg3[%c0_34, %c0_35] : memref<8x1xf32, #tpu.memory_space<vmem>>, vector<8x1xf32>
    %30 = vector.broadcast %29 : vector<8x1xf32> to vector<8x256xf32>
    %31 = arith.addf %28, %30 : vector<8x256xf32>
    %c0_36 = arith.constant 0 : index
    %c0_37 = arith.constant 0 : index
    %c0_38 = arith.constant 0 : index
    %32 = vector.load %arg4[%c0_36, %c0_37, %c0_38] : memref<1x8x256xf32, #tpu.memory_space<vmem>>, vector<1x8x256xf32>
    %33 = vector.shape_cast %32 : vector<1x8x256xf32> to vector<8x256xf32>
    %34 = vector.shape_cast %31 : vector<8x256xf32> to vector<1x8x256xf32>
    tpu.vector_store %arg4[%c0_36, %c0_37, %c0_38], %34 {strides = array<i32>} : memref<1x8x256xf32, #tpu.memory_space<vmem>>, vector<1x8x256xf32>,
    return
  }
  func.func @transform_0(%arg0: i32) -> (i32, i32, i32) {
    %c0_i32 = arith.constant 0 : i32
    %c0_i32_0 = arith.constant 0 : i32
    %c0_i32_1 = arith.constant 0 : i32
    return %arg0, %c0_i32, %c0_i32_0 : i32, i32, i32
  }
  func.func @transform_1(%arg0: i32) -> (i32, i32) {
    %c0_i32 = arith.constant 0 : i32
    %c0_i32_0 = arith.constant 0 : i32
    %c0_i32_1 = arith.constant 0 : i32
    return %c0_i32, %c0_i32_0 : i32, i32
  }
  func.func @transform_2(%arg0: i32) -> (i32, i32) {
    %c0_i32 = arith.constant 0 : i32
    %c0_i32_0 = arith.constant 0 : i32
    %c0_i32_1 = arith.constant 0 : i32
    return %c0_i32, %c0_i32_0 : i32, i32
  }
  func.func @transform_3(%arg0: i32) -> (i32, i32, i32) {
    %c0_i32 = arith.constant 0 : i32
    %c0_i32_0 = arith.constant 0 : i32
    %c0_i32_1 = arith.constant 0 : i32
    return %arg0, %c0_i32, %c0_i32_0 : i32, i32, i32
  }
}

</mosaic_0001>

<llo_original>
// kernel: concat_conv2d_forward.1
$region0: #{concat_conv2d_forward.1}
  #allocation0 [shape = 'u32[]', space=smem, size = 0x4, offset = 0x4, fixed_abs, tag = 'smem constant byte address 0x4 - core index']
  #allocation1 [shape = 'u32[144,128]{1,0:T(1,128)}', space=vmem, size = 0x12000, scoped, tag = 'internal scratch']
  #allocation2 [shape = 'bf16[4,384]{1,0:T(4,128)(2,1)}', space=vmem, size = 0xc00, scoped, tag = 'scratch operand']
  #allocation3 [shape = 'bf16[40,256]{1,0:T(8,128)(2,1)}', space=vmem, size = 0x5000, scoped, tag = 'scratch operand']
  %s0 = inlined_call_operand.vmem [shape: f32[2,4,256], index: 0, kind: input, shape index: {}]
  %s1 = inlined_call_operand.vmem [shape: bf16[8,40], index: 1, kind: input, shape index: {}]
  %s2 = inlined_call_operand.vmem [shape: f32[8,1], index: 2, kind: input, shape index: {}]
  %s3 = inlined_call_operand.vmem [shape: f32[2,8,256], index: 3, kind: output, shape index: {}]
  %s4 = sld [smem:[#allocation0]]
  $region45: #{concat_conv2d_forward.1} parent=0
    _
  %s6 = ssub.s32 1, %s4
  %s7 = scalar_select 0, %s6, %s4
  loop: start=0, step=1, limit=4
  $region2: #{concat_conv2d_forward.1} parent=0 // loop_pre_header
    _
  $region3: #{concat_conv2d_forward.1} parent=0 // loop_header
    %s9 = sphi 0, %s13
    %p10 = scmp.ge.s32.totalorder %s9, 4
    %s19 = sphi 0, %s21
    %s22 = sphi 0, %s19
    %s23 = sphi 0, %s22
    %s39 = sphi 0, %s23
    %s43 = sphi 0, %s43
    %s45 = sphi 0, %s43
    %s46 = sphi 0, %s45
    %s60 = sphi 0, %s46
    %s64 = sphi 0, %s64
    %s66 = sphi 0, %s64
    %s67 = sphi 0, %s66
    %s81 = sphi 0, %s67
    %s87 = sphi 0, %s89
    %s90 = sphi 0, %s87
    %s91 = sphi 0, %s90
    %s107 = sphi 0, %s91
  $region4: #{concat_conv2d_forward.1} parent=0 // loop_header_branch
    %12 = sbr.rel (%p10) target = $region8
  $region5: #{concat_conv2d_forward.1} parent=0 // loop_body
    %s14 = ssub.s32 %s9, 1
    %s15 = ssub.s32 %s9, 2
    %s16 = sadd.s32 %s9, 1
    %s17 = ssub.s32 %s9, %s16
    %p18 = scmp.eq.s32.totalorder %s17, 0
    %s20 = sadd.s32 %s19, 1
    %s21 = scalar_select %p18, %s19, %s20
    %p24 = pneg %p18
    %p25 = scmp.eq.s32.totalorder %s9, 1
    %p26 = por %p24, %p25
    %p27 = scmp.ne.s32.totalorder %s19, %s22
    %p28 = scmp.eq.s32.totalorder %s9, 0
    %p29 = por %p27, %p28
    %p30 = scmp.ne.s32.totalorder %s19, %s22
    %p31 = scmp.eq.s32.totalorder %s14, 1
    %p32 = por %p30, %p31
    %p33 = scmp.ne.s32.totalorder %s22, %s23
    %p34 = scmp.eq.s32.totalorder %s14, 0
    %p35 = por %p33, %p34
    %p36 = scmp.ne.s32.totalorder %s22, %s23
    %p37 = scmp.eq.s32.totalorder %s15, 1
    %p38 = por %p36, %p37
    %p40 = scmp.ne.s32.totalorder %s23, %s39
    %p41 = scmp.eq.s32.totalorder %s15, 0
    %p42 = por %p40, %p41
    %s44 = sadd.s32 %s43, 1
    %p47 = scmp.eq.s32.totalorder %s9, 1
    %p48 = scmp.ne.s32.totalorder %s43, %s45
    %p49 = scmp.eq.s32.totalorder %s9, 0
    %p50 = por %p48, %p49
    %p51 = scmp.ne.s32.totalorder %s43, %s45
    %p52 = scmp.eq.s32.totalorder %s14, 1
    %p53 = por %p51, %p52
    %p54 = scmp.ne.s32.totalorder %s45, %s46
    %p55 = scmp.eq.s32.totalorder %s14, 0
    %p56 = por %p54, %p55
    %p57 = scmp.ne.s32.totalorder %s45, %s46
    %p58 = scmp.eq.s32.totalorder %s15, 1
    %p59 = por %p57, %p58
    %p61 = scmp.ne.s32.totalorder %s46, %s60
    %p62 = scmp.eq.s32.totalorder %s15, 0
    %p63 = por %p61, %p62
    %s65 = sadd.s32 %s64, 1
    %p68 = scmp.eq.s32.totalorder %s9, 1
    %p69 = scmp.ne.s32.totalorder %s64, %s66
    %p70 = scmp.eq.s32.totalorder %s9, 0
    %p71 = por %p69, %p70
    %p72 = scmp.ne.s32.totalorder %s64, %s66
    %p73 = scmp.eq.s32.totalorder %s14, 1
    %p74 = por %p72, %p73
    %p75 = scmp.ne.s32.totalorder %s66, %s67
    %p76 = scmp.eq.s32.totalorder %s14, 0
    %p77 = por %p75, %p76
    %p78 = scmp.ne.s32.totalorder %s66, %s67
    %p79 = scmp.eq.s32.totalorder %s15, 1
    %p80 = por %p78, %p79
    %p82 = scmp.ne.s32.totalorder %s67, %s81
    %p83 = scmp.eq.s32.totalorder %s15, 0
    %p84 = por %p82, %p83
    %s85 = ssub.s32 %s9, %s16
    %p86 = scmp.eq.s32.totalorder %s85, 0
    %s88 = sadd.s32 %s87, 1
    %s89 = scalar_select %p86, %s87, %s88
    %p92 = pneg %p86
    %p93 = scmp.eq.s32.totalorder %s9, 1
    %p94 = por %p92, %p93
    %p95 = scmp.ne.s32.totalorder %s87, %s90
    %p96 = scmp.eq.s32.totalorder %s9, 0
    %p97 = por %p95, %p96
    %p98 = scmp.ne.s32.totalorder %s87, %s90
    %p99 = scmp.eq.s32.totalorder %s14, 1
    %p100 = por %p98, %p99
    %p101 = scmp.ne.s32.totalorder %s90, %s91
    %p102 = scmp.eq.s32.totalorder %s14, 0
    %p103 = por %p101, %p102
    %p104 = scmp.ne.s32.totalorder %s90, %s91
    %p105 = scmp.eq.s32.totalorder %s15, 1
    %p106 = por %p104, %p105
    %p108 = scmp.ne.s32.totalorder %s91, %s107
    %p109 = scmp.eq.s32.totalorder %s15, 0
    %p110 = por %p108, %p109
    %p111 = scmp.le.s32.totalorder 1, %s9
    %p112 = scmp.lt.s32.totalorder %s9, 3
    %p113 = pnand %p111, %p112
    %p114 = pneg %p113
    // Predicated region
    $region9: #{concat_conv2d_forward.1} parent=5 // pred_check
      _
    $region10: #{concat_conv2d_forward.1} parent=5 // pred_check_branch
      %116 = sbr.rel (%p113) target = $region12
    $region11: #{concat_conv2d_forward.1} parent=5 // pred_region
      %s117 = ssub.s32 %s9, 1
      // Predicated region
      $region13: #{concat_conv2d_forward.1} parent=11 // pred_check
        %p118 = pneg %p56
      $region14: #{concat_conv2d_forward.1} parent=11 // pred_check_branch
        %120 = sbr.rel (%p118) target = $region16
      $region15: #{concat_conv2d_forward.1} parent=11 // pred_region
        _
      $region16: #{concat_conv2d_forward.1} parent=11 // pred_fallthru
        _
      // Predicated region
      $region17: #{concat_conv2d_forward.1} parent=11 // pred_check
        %p121 = pneg %p77
      $region18: #{concat_conv2d_forward.1} parent=11 // pred_check_branch
        %123 = sbr.rel (%p121) target = $region20
      $region19: #{concat_conv2d_forward.1} parent=11 // pred_region
        _
      $region20: #{concat_conv2d_forward.1} parent=11 // pred_fallthru
        _
    $region12: #{concat_conv2d_forward.1} parent=5 // pred_fallthru
      _
    %p124 = scmp.lt.s32.totalorder %s9, 2
    // Predicated region
    $region21: #{concat_conv2d_forward.1} parent=5 // pred_check
      %p125 = pneg %p124
    $region22: #{concat_conv2d_forward.1} parent=5 // pred_check_branch
      %127 = sbr.rel (%p125) target = $region24
    $region23: #{concat_conv2d_forward.1} parent=5 // pred_region
      // Predicated region
      $region25: #{concat_conv2d_forward.1} parent=23 // pred_check
        %p128 = pneg %p29
      $region26: #{concat_conv2d_forward.1} parent=23 // pred_check_branch
        %130 = sbr.rel (%p128) target = $region28
      $region27: #{concat_conv2d_forward.1} parent=23 // pred_region
        %p131 = scmp.lt.s32.totalorder %s9, 1
        %s132 = scalar_select %p131, %s9, 1
        %s133 = smul.addr %s132, 2
        %s134 = smul.addr %s133, 4
        %s135 = scalar_lea.vmem %s0, %s134
      $region28: #{concat_conv2d_forward.1} parent=23 // pred_fallthru
        _
    $region24: #{concat_conv2d_forward.1} parent=5 // pred_fallthru
      _
    %p136 = scmp.le.s32.totalorder 1, %s9
    %p137 = scmp.lt.s32.totalorder %s9, 3
    %p138 = pnand %p136, %p137
    %p139 = pneg %p138
    // Predicated region
    $region29: #{concat_conv2d_forward.1} parent=5 // pred_check
      _
    $region30: #{concat_conv2d_forward.1} parent=5 // pred_check_branch
      %141 = sbr.rel (%p138) target = $region32
    $region31: #{concat_conv2d_forward.1} parent=5 // pred_region
      %s142 = ssub.s32 %s9, 1
      %p143 = scmp.lt.s32.totalorder %s14, 1
      %s144 = scalar_select %p143, %s14, 1
      %s145 = smul.addr %s144, 2
      %s146 = smul.addr %s145, 4
      %s147 = scalar_lea.vmem %s0, %s146
      %p148 = pneg %p35
      %p149 = pneg %p32
      %p150 = pneg %p56
      %p151 = pneg %p53
      %p152 = pneg %p77
      %p153 = pneg %p74
      %p154 = pneg %p103
      %p155 = pneg %p100
      %p156 = scmp.lt.s32.totalorder %s14, 1
      %s157 = scalar_select %p156, %s14, 1
      %s158 = smul.addr %s157, 2
      %s159 = smul.addr %s158, 8
      %s160 = scalar_lea.vmem %s3, %s159
      %p161 = scmp.lt.s32.totalorder %s14, 1
      %s162 = scalar_select %p161, %s14, 1
      %s163 = smul.addr %s162, 2
      %s164 = smul.addr %s163, 4
      %s165 = scalar_lea.vmem %s0, %s164
      %p166 = scmp.lt.s32.totalorder %s14, 1
      %s167 = scalar_select %p166, %s14, 1
      %s168 = smul.addr %s167, 2
      %s169 = smul.addr %s168, 8
      %s170 = scalar_lea.vmem %s3, %s169
      %172 = vst [vmem:[#allocation2 + $0x4] sm:$0x3] 0
      %v173 = vld [vmem:[%s165] sm:$0xff]
      %v175 = vcombine.high %v173, %v173
      %v177 = vpack.c.bf16 %v173, %v173
      %v178 = vpack.c.bf16 %v175, %v175
      %v181 = vcombine.low %v177, %v178
      %v183 = vunpack.c.l.s4 1983009808
      %v184 = vunpack.c.0.s8 %v183
      %v185 = vlaneseq
      %v186 = vshrl.u32 %v185, 7
      %v187 = vsub.s32 %v184, %v186
      %v188 = vrot.slane %v181, %v187
      %190 = vst [vmem:[#allocation2] sm:$0xf] %v188
      %v191 = vld [vmem:[#allocation2] sm:$0xf]
      %v194 = vunpack.c.l.s4 1983009808
      %v195 = vunpack.c.0.s8 %v194
      %v196 = vlaneseq
      %v197 = vshrl.u32 %v196, 7
      %v198 = vsub.s32 %v195, %v197
      %v199 = vrot.slane %v191, %v198
      %201 = vst [vmem:[#allocation3] sm:$0x33] %v199
      %v202 = vld [vmem:[#allocation2] sm:$0x3f]
      %v204 = vcombine.low %v202, %v202
      %v206 = vunpack.c.l.s4 1983009808
      %v207 = vunpack.c.0.s8 %v206
      %v208 = vlaneseq
      %v209 = vshrl.u32 %v208, 7
      %v210 = vsub.s32 %v207, %v209
      %v211 = vrot.slane %v204, %v210
      %v213 = vunpack.c.l.s4 1983009808
      %v214 = vunpack.c.0.s8 %v213
      %v215 = vlaneseq
      %v216 = vshrl.u32 %v215, 7
      %v217 = vsub.s32 %v214, %v216
      %v218 = vrot.slane %v202, %v217
      %219 = vrot.lane.b32.xlu0 %v211, 127
      %v220 = vpop.permute.xlu0 %219
      %221 = vrot.lane.b32.xlu0 %v218, 127
      %v222 = vpop.permute.xlu0 %221
      %v223 = vrot.slane %v220, 4
      %v224 = vrot.slane %v222, 4
      %vm225 = vcmask 1043456
      %v226 = vsel %vm225, %v223, %v224
      %vm227 = vcmask 1039360
      %v228 = vsel %vm227, %v220, %v226
      %230 = vst [vmem:[#allocation3] sm:$0xcc] %v228
      %v231 = vld [vmem:[#allocation2] sm:$0x3f]
      %v233 = vcombine.high %v231, %v231
      %v235 = vunpack.c.l.s4 1983009808
      %v236 = vunpack.c.0.s8 %v235
      %v237 = vlaneseq
      %v238 = vshrl.u32 %v237, 7
      %v239 = vsub.s32 %v236, %v238
      %v240 = vrot.slane %v231, %v239
      %v242 = vunpack.c.l.s4 1983009808
      %v243 = vunpack.c.0.s8 %v242
      %v244 = vlaneseq
      %v245 = vshrl.u32 %v244, 7
      %v246 = vsub.s32 %v243, %v245
      %v247 = vrot.slane %v233, %v246
      %248 = vrot.lane.b32.xlu0 %v240, 126
      %v249 = vpop.permute.xlu0 %248
      %250 = vrot.lane.b32.xlu0 %v247, 126
      %v251 = vpop.permute.xlu0 %250
      %v252 = vrot.slane %v249, 4
      %v253 = vrot.slane %v251, 4
      %v254 = vsel %vm225, %v252, %v253
      %vm255 = vcmask 1031168
      %v256 = vsel %vm255, %v249, %v254
      %258 = vst [vmem:[#allocation3 + $0x8] sm:$0x33] %v256
      %v259 = vld [vmem:[#allocation2] sm:$0x3f]
      %v261 = vcombine.low %v259, %v259
      %v263 = vunpack.c.l.s4 1983009808
      %v264 = vunpack.c.0.s8 %v263
      %v265 = vlaneseq
      %v266 = vshrl.u32 %v265, 7
      %v267 = vsub.s32 %v264, %v266
      %v268 = vrot.slane %v261, %v267
      %v270 = vunpack.c.l.s4 1983009808
      %v271 = vunpack.c.0.s8 %v270
      %v272 = vlaneseq
      %v273 = vshrl.u32 %v272, 7
      %v274 = vsub.s32 %v271, %v273
      %v275 = vrot.slane %v259, %v274
      %276 = vrot.lane.b32.xlu0 %v268, 112
      %v277 = vpop.permute.xlu0 %276
      %278 = vrot.lane.b32.xlu0 %v275, 112
      %v279 = vpop.permute.xlu0 %278
      %v280 = vrot.slane %v277, 4
      %v281 = vrot.slane %v279, 4
      %v282 = vsel %vm225, %v280, %v281
      %vm283 = vcmask 916480
      %v284 = vsel %vm283, %v277, %v282
      %286 = vst [vmem:[#allocation3 + $0x8] sm:$0xcc] %v284
      %v287 = vld [vmem:[#allocation2] sm:$0x3f]
      %v289 = vcombine.high %v287, %v287
      %v291 = vunpack.c.l.s4 1983009808
      %v292 = vunpack.c.0.s8 %v291
      %v293 = vlaneseq
      %v294 = vshrl.u32 %v293, 7
      %v295 = vsub.s32 %v292, %v294
      %v296 = vrot.slane %v287, %v295
      %v298 = vunpack.c.l.s4 1983009808
      %v299 = vunpack.c.0.s8 %v298
      %v300 = vlaneseq
      %v301 = vshrl.u32 %v300, 7
      %v302 = vsub.s32 %v299, %v301
      %v303 = vrot.slane %v289, %v302
      %304 = vrot.lane.b32.xlu0 %v296, 111
      %v305 = vpop.permute.xlu0 %304
      %306 = vrot.lane.b32.xlu0 %v303, 111
      %v307 = vpop.permute.xlu0 %306
      %v308 = vrot.slane %v305, 4
      %v309 = vrot.slane %v307, 4
      %v310 = vsel %vm225, %v308, %v309
      %vm311 = vcmask 908288
      %v312 = vsel %vm311, %v305, %v310
      %314 = vst [vmem:[#allocation3 + $0x10] sm:$0x33] %v312
      %v315 = vld [vmem:[#allocation2] sm:$0x3f]
      %v317 = vcombine.low %v315, %v315
      %v319 = vunpack.c.l.s4 1983009808
      %v320 = vunpack.c.0.s8 %v319
      %v321 = vlaneseq
      %v322 = vshrl.u32 %v321, 7
      %v323 = vsub.s32 %v320, %v322
      %v324 = vrot.slane %v317, %v323
      %v326 = vunpack.c.l.s4 1983009808
      %v327 = vunpack.c.0.s8 %v326
      %v328 = vlaneseq
      %v329 = vshrl.u32 %v328, 7
      %v330 = vsub.s32 %v327, %v329
      %v331 = vrot.slane %v315, %v330
      %332 = vrot.lane.b32.xlu0 %v324, 110
      %v333 = vpop.permute.xlu0 %332
      %334 = vrot.lane.b32.xlu0 %v331, 110
      %v335 = vpop.permute.xlu0 %334
      %v336 = vrot.slane %v333, 4
      %v337 = vrot.slane %v335, 4
      %v338 = vsel %vm225, %v336, %v337
      %vm339 = vcmask 900096
      %v340 = vsel %vm339, %v333, %v338
      %342 = vst [vmem:[#allocation3 + $0x10] sm:$0xcc] %v340
      %v343 = vld [vmem:[#allocation2] sm:$0x3f]
      %v345 = vcombine.high %v343, %v343
      %v347 = vunpack.c.l.s4 1983009808
      %v348 = vunpack.c.0.s8 %v347
      %v349 = vlaneseq
      %v350 = vshrl.u32 %v349, 7
      %v351 = vsub.s32 %v348, %v350
      %v352 = vrot.slane %v343, %v351
      %v354 = vunpack.c.l.s4 1983009808
      %v355 = vunpack.c.0.s8 %v354
      %v356 = vlaneseq
      %v357 = vshrl.u32 %v356, 7
      %v358 = vsub.s32 %v355, %v357
      %v359 = vrot.slane %v345, %v358
      %360 = vrot.lane.b32.xlu0 %v352, 96
      %v361 = vpop.permute.xlu0 %360
      %362 = vrot.lane.b32.xlu0 %v359, 96
      %v363 = vpop.permute.xlu0 %362
      %v364 = vrot.slane %v361, 4
      %v365 = vrot.slane %v363, 4
      %v366 = vsel %vm225, %v364, %v365
      %vm367 = vcmask 785408
      %v368 = vsel %vm367, %v361, %v366
      %370 = vst [vmem:[#allocation3 + $0x18] sm:$0x33] %v368
      %v371 = vld [vmem:[#allocation2] sm:$0x3f]
      %v373 = vcombine.low %v371, %v371
      %v375 = vunpack.c.l.s4 1983009808
      %v376 = vunpack.c.0.s8 %v375
      %v377 = vlaneseq
      %v378 = vshrl.u32 %v377, 7
      %v379 = vsub.s32 %v376, %v378
      %v380 = vrot.slane %v373, %v379
      %v382 = vunpack.c.l.s4 1983009808
      %v383 = vunpack.c.0.s8 %v382
      %v384 = vlaneseq
      %v385 = vshrl.u32 %v384, 7
      %v386 = vsub.s32 %v383, %v385
      %v387 = vrot.slane %v371, %v386
      %388 = vrot.lane.b32.xlu0 %v380, 95
      %v389 = vpop.permute.xlu0 %388
      %390 = vrot.lane.b32.xlu0 %v387, 95
      %v391 = vpop.permute.xlu0 %390
      %v392 = vrot.slane %v389, 4
      %v393 = vrot.slane %v391, 4
      %v394 = vsel %vm225, %v392, %v393
      %vm395 = vcmask 777216
      %v396 = vsel %vm395, %v389, %v394
      %398 = vst [vmem:[#allocation3 + $0x18] sm:$0xcc] %v396
      %v399 = vld [vmem:[#allocation2] sm:$0x3f]
      %v401 = vcombine.high %v399, %v399
      %v403 = vunpack.c.l.s4 1983009808
      %v404 = vunpack.c.0.s8 %v403
      %v405 = vlaneseq
      %v406 = vshrl.u32 %v405, 7
      %v407 = vsub.s32 %v404, %v406
      %v408 = vrot.slane %v399, %v407
      %v410 = vunpack.c.l.s4 1983009808
      %v411 = vunpack.c.0.s8 %v410
      %v412 = vlaneseq
      %v413 = vshrl.u32 %v412, 7
      %v414 = vsub.s32 %v411, %v413
      %v415 = vrot.slane %v401, %v414
      %416 = vrot.lane.b32.xlu0 %v408, 94
      %v417 = vpop.permute.xlu0 %416
      %418 = vrot.lane.b32.xlu0 %v415, 94
      %v419 = vpop.permute.xlu0 %418
      %v420 = vrot.slane %v417, 4
      %v421 = vrot.slane %v419, 4
      %v422 = vsel %vm225, %v420, %v421
      %vm423 = vcmask 769024
      %v424 = vsel %vm423, %v417, %v422
      %426 = vst [vmem:[#allocation3 + $0x20] sm:$0x33] %v424
      %427 = vst [vmem:[#allocation3 + $0x20] sm:$0xcc] 0
      %v428 = vld [vmem:[%s1] sm:$0xf]
      %v429 = vld [vmem:[#allocation3] sm:$0xff]
      %v430 = vld [vmem:[#allocation3 + $0x8] sm:$0xff]
      %v431 = vld [vmem:[#allocation3 + $0x10] sm:$0xff]
      %v432 = vld [vmem:[#allocation3 + $0x18] sm:$0xff]
      %v433 = vld [vmem:[#allocation3 + $0x20] sm:$0xff]
      %v434 = vld [vmem:[%s2] sm:$0xff]
      %436 = vset.pattern.permute.xlu0 0
      %437 = vperm.xlu0 %436, %v434
      %v438 = vpop.permute.xlu0 %437
      %v445 = vunpack.c.l.b16 %v429
      %v446 = vunpack.c.h.b16 %v429
      %v447 = vunpack.c.l.b16 %v430
      %v448 = vunpack.c.h.b16 %v430
      %v449 = vunpack.c.l.b16 %v431
      %v450 = vunpack.c.h.b16 %v431
      %v451 = vunpack.c.l.b16 %v432
      %v452 = vunpack.c.h.b16 %v432
      %v453 = vunpack.c.l.b16 %v433
      %v454 = vunpack.c.h.b16 %v433
      %v455 = vpack.c.b16 %v447, %v445
      %v456 = vpack.c.b16 %v448, %v446
      %v457 = vpack.c.b16 %v451, %v449
      %v458 = vpack.c.b16 %v452, %v450
      %v459 = vpack.c.b16 %v453, %v453
      %v460 = vpack.c.b16 %v454, %v454
      %vm465 = vcmask 326656
      %v467 = vsel %vm465, %v428, 0
      %vm469 = vcmask 1043456
      %v471 = vsel %vm469, %v459, 0
      %v474 = vsel %vm469, %v460, 0
      %476 = vmatprep.subr.bf16.mxu0 %v456
      %477 = vmatpush1.bf16.msra.mxu0 %v455
      %478 = vmatprep.subr.bf16.mxu0 %v458
      %479 = vmatpush1.bf16.msra.mxu0 %v457
      %480 = vmatprep.subr.bf16.mxu0 %v474
      %481 = vmatpush1.bf16.msra.mxu0 %v471
      %482 = vmatprep.subr.bf16.mxu0 0
      %483 = vmatpush1.bf16.msra.mxu0 0
      %484 = vmatprep.subr.bf16.mxu0 0
      %485 = vmatpush1.bf16.msra.mxu0 0
      %486 = vmatprep.subr.bf16.mxu0 0
      %487 = vmatpush1.bf16.msra.mxu0 0
      %488 = vmatprep.subr.bf16.mxu0 0
      %489 = vmatpush1.bf16.msra.mxu0 0
      %490 = vmatprep.subr.bf16.mxu0 0
      %491 = vmatpush1.bf16.msra.mxu0 0
      %492 = vmatprep.subr.bf16.mxu0 0
      %493 = vmatpush1.bf16.msra.mxu0 0
      %494 = vmatprep.subr.bf16.mxu0 0
      %495 = vmatpush1.bf16.msra.mxu0 0
      %496 = vmatprep.subr.bf16.mxu0 0
      %497 = vmatpush1.bf16.msra.mxu0 0
      %498 = vmatprep.subr.bf16.mxu0 0
      %499 = vmatpush1.bf16.msra.mxu0 0
      %500 = vmatprep.subr.bf16.mxu0 0
      %501 = vmatpush1.bf16.msra.mxu0 0
      %502 = vmatprep.subr.bf16.mxu0 0
      %503 = vmatpush1.bf16.msra.mxu0 0
      %504 = vmatprep.subr.bf16.mxu0 0
      %505 = vmatpush1.bf16.msra.mxu0 0
      %506 = vmatprep.subr.bf16.mxu0 0
      %507 = vmatpush1.bf16.msra.mxu0 0
      %508 = vmatprep.mubr.bf16.mxu0 0
      %509 = vmatmul.mubr.bf16.gmra.mrb[0].mxu0 %v467
      %v510 = vpop.f32.mrb[0].mxu0
      %v511 = vadd.f32 %v438, %v510
      %v512 = vpop.f32.mrb[0].mxu0
      %v513 = vadd.f32 %v438, %v512
      %v514 = vpop.f32.mrb[0].mxu0
      %v515 = vpop.f32.mrb[0].mxu0
      %516 = vdwg.mxu0
      %517 = vst [vmem:[%s170] sm:$0xff] %v511
      %518 = vst [vmem:[%s170 + $0x8] sm:$0xff] %v513
      %p519 = scmp.lt.s32.totalorder %s14, 1
      %s520 = scalar_select %p519, %s14, 1
      %s521 = smul.addr %s520, 2
      %s522 = smul.addr %s521, 8
      %s523 = scalar_lea.vmem %s3, %s522
      // Predicated region
      $region33: #{concat_conv2d_forward.1} parent=31 // pred_check
        %p524 = pneg %p100
      $region34: #{concat_conv2d_forward.1} parent=31 // pred_check_branch
        %526 = sbr.rel (%p524) target = $region36
      $region35: #{concat_conv2d_forward.1} parent=31 // pred_region
        _
      $region36: #{concat_conv2d_forward.1} parent=31 // pred_fallthru
        _
    $region32: #{concat_conv2d_forward.1} parent=5 // pred_fallthru
      _
    %p527 = scmp.le.s32.totalorder 2, %s9
    // Predicated region
    $region37: #{concat_conv2d_forward.1} parent=5 // pred_check
      %p528 = pneg %p527
    $region38: #{concat_conv2d_forward.1} parent=5 // pred_check_branch
      %530 = sbr.rel (%p528) target = $region40
    $region39: #{concat_conv2d_forward.1} parent=5 // pred_region
      %s531 = ssub.s32 %s9, 2
      // Predicated region
      $region41: #{concat_conv2d_forward.1} parent=39 // pred_check
        %p532 = pneg %p106
      $region42: #{concat_conv2d_forward.1} parent=39 // pred_check_branch
        %534 = sbr.rel (%p532) target = $region44
      $region43: #{concat_conv2d_forward.1} parent=39 // pred_region
        %p535 = scmp.lt.s32.totalorder %s15, 1
        %s536 = scalar_select %p535, %s15, 1
        %s537 = smul.addr %s536, 2
        %s538 = smul.addr %s537, 8
        %s539 = scalar_lea.vmem %s3, %s538
      $region44: #{concat_conv2d_forward.1} parent=39 // pred_fallthru
        _
    $region40: #{concat_conv2d_forward.1} parent=5 // pred_fallthru
      _
  $region6: #{concat_conv2d_forward.1} parent=0 // loop_footer
    %s13 = sadd.s32 1, %s9
  $region7: #{concat_conv2d_forward.1} parent=0 // loop_footer_branch
    %8 = sbr.rel target = $region3
  $region8: #{concat_conv2d_forward.1} parent=0 // loop_exit
    _

</llo_original>
